<compile_context>
chip_gen: v6e
topology: v6e:2x2x1
jax: 0.10.0
libtpu: 0.0.40
codegen_flags: <defaults>
</compile_context>

<pallas_src>
import jax
import jax.numpy as jnp
from jax.experimental import pallas as pl
from jax.experimental.pallas import tpu as pltpu


# ----------------------------------------------------------------------------
# Helpers: hardware query, tile selection, shared encoder math.
# ----------------------------------------------------------------------------
def _vmem_capacity_bytes():
    try:
        return int(pltpu.get_tpu_info().vmem_capacity_bytes)
    except Exception:
        return 64 * 1024 * 1024  # conservative (v7x-sized) default


def _vmem_limit(est_bytes):
    cap = _vmem_capacity_bytes()
    return int(min(max(32 * 1024 * 1024, est_bytes + (8 << 20)), cap - (8 << 20)))


def _divisors_desc(n, cap):
    cap = min(cap, n)
    return [d for d in range(cap, 0, -1) if n % d == 0]


def _pick_tile(n, target):
    """Largest divisor of n <= target, preferring sublane-aligned (x8) tiles."""
    for d in _divisors_desc(n, target):
        if d % 8 == 0 or d == n:
            return d
    return n


def _choose_gather_tiles(B, S, D, itemsize, budget):
    """(tb, ts) for the fused-gather kernel, or None if nothing sane fits."""

    def cost(tb, ts):
        # double-buffered gather buffer + live f32 activations + accumulator
        return tb * ts * D * (2 * itemsize + 2 * 4) + tb * D * 4

    ts = None
    for d in _divisors_desc(S, 1024):
        if (d % 8 == 0 or d == S) and cost(8, d) <= budget:
            ts = d
            break
    if ts is None:
        return None

    # Keep B//tb even when possible so the "parallel" grid axis feeds both
    # v7x TensorCores; aim for >= 512 MXU rows (tb*ts) per grid step.
    tb_pool = B // 2 if (B % 2 == 0 and B >= 2) else B
    target = max(8, -(-512 // ts))
    for pool in (tb_pool, B):
        for d in _divisors_desc(pool, max(target, 8)):
            if (d % 8 == 0 or d == B) and cost(d, ts) <= budget:
                return d, ts
    return None


def _make_encode_step(tb, ts, D):
    """Shared synthetic-encoder math for one (tb, ts, D) tile."""

    def encode_step(x3, pos_tile, w_enc, b_enc):
        # token emb + positional emb, flattened to one tall MXU matmul.
        x = (x3 + pos_tile[None, :, :]).reshape(tb * ts, D)
        h = jnp.dot(x, w_enc, preferred_element_type=jnp.float32)  # MXU, f32 acc
        h = jnp.tanh(h + b_enc)                                    # EUP
        # partial mean-pool: per-batch-row sums over this seq tile.
        return h.reshape(tb, ts, D).sum(axis=1)                    # (tb, D) f32

    return encode_step


def _pad_proj(params, D, Lp, L):
    w_proj_p = jnp.pad(params["w_proj"].astype(jnp.float32), ((0, 0), (0, Lp - L)))
    b_proj_p = jnp.pad(params["b_proj"].astype(jnp.float32), (0, Lp - L)).reshape(1, Lp)
    b_enc_2d = params["b_enc"].astype(jnp.float32).reshape(1, D)
    return w_proj_p, b_proj_p, b_enc_2d


# ----------------------------------------------------------------------------
# Path 1: fused HBM embedding gather (lane-aligned D).
# ----------------------------------------------------------------------------
def _forward_fused_gather(tokens, params, tb, ts):
    emb_table = params["emb_table"]          # (V, D)
    pos_emb = params["pos_emb"]              # (S, D)
    w_enc = params["w_enc"]                  # (D, D)

    B, S = tokens.shape
    V, D = emb_table.shape
    L = params["w_proj"].shape[1]
    Lp = ((L + 127) // 128) * 128

    assert B % tb == 0 and S % ts == 0
    assert (tb % 8 == 0 or tb == B) and (ts % 8 == 0 or ts == S)

    n_bt, n_st = B // tb, S // ts
    NC = 2 if (n_bt % 2 == 0 and n_bt >= 2) else 1   # megacore split (v7x: 2 TCs)
    n_bt_pc = n_bt // NC

    w_proj_p, b_proj_p, b_enc_2d = _pad_proj(params, D, Lp, L)
    tokens_flat = tokens.astype(jnp.int32).reshape(B * S)   # 1-D -> no SMEM padding
    inv_s = 1.0 / float(S)
    encode_step = _make_encode_step(tb, ts, D)

    def kernel(tok_ref,       # SMEM (B*S,) int32 (scalar prefetch)
               pos_ref,       # VMEM (S, D)   (loaded once)
               w_enc_ref,     # VMEM (D, D)
               b_enc_ref,     # VMEM (1, D)   f32
               w_proj_ref,    # VMEM (D, Lp)  f32
               b_proj_ref,    # VMEM (1, Lp)  f32
               emb_hbm,       # ANY  (V, D)   raw HBM embedding table
               out_ref,       # VMEM (tb, Lp) f32
               emb_buf,       # VMEM (2, tb, ts, D) gather double buffer
               acc_ref,       # VMEM (tb, D)  f32 pooled-sum scratch
               sem):          # DMA sems (2,)
        c = pl.program_id(0)           # core split ("parallel")
        ib = pl.program_id(1)          # batch tile within core ("arbitrary")
        j = pl.program_id(2)           # seq tile ("arbitrary" reduction)
        # Per-core step counter: the inner (ib, j) axes run sequentially on a
        # core, so slot parity and cross-step prefetch stay consistent even
        # across batch-tile boundaries.
        t = ib * n_st + j
        slot = t % 2

        def issue_gather(bt_global, seq_tile, slot_):
            # One D-row DMA per token; per-row scalar math is hoisted out of
            # the static inner loop, destinations land at static sublane rows.
            tok0 = bt_global * (tb * S) + seq_tile * ts

            @pl.loop(0, tb)
            def _(b):
                row = tok0 + b * S
                for s in range(ts):
                    tok = jnp.clip(tok_ref[row + s], 0, V - 1)   # guard OOB ids
                    pltpu.make_async_copy(
                        emb_hbm.at[tok], emb_buf.at[slot_, b, s],
                        sem.at[slot_]).start()

        def wait_gather(slot_):
            # Single coalesced wait: DMA semaphores count bytes, so one wait
            # sized to the whole (tb, ts, D) slot covers all per-row copies.
            pltpu.make_async_copy(emb_buf.at[slot_], emb_buf.at[slot_],
                                  sem.at[slot_]).wait()

        # Prime only the very first step on this core (the single exposed
        # gather per core).
        @pl.when(t == 0)
        def _():
            issue_gather(c * n_bt_pc + ib, j, slot)

        # Prefetch the NEXT step's rows into the other slot, crossing batch
        # tile boundaries too.  Issued before the wait so the SMEM reads and
        # descriptor pushes overlap the inbound DMA.
        @pl.when(t + 1 < n_bt_pc * n_st)
        def _():
            nt = t + 1
            nib = nt // n_st
            nj = nt - nib * n_st
            issue_gather(c * n_bt_pc + nib, nj, 1 - slot)

        @pl.when(j == 0)
        def _():
            acc_ref[...] = jnp.zeros_like(acc_ref)

        wait_gather(slot)

        pos_tile = pos_ref[pl.ds(pl.multiple_of(j * ts, ts), ts), :]
        acc_ref[...] += encode_step(emb_buf[slot], pos_tile,
                                    w_enc_ref[...], b_enc_ref[...])

        # Last seq step: mean pool, then logits projection (lane-dense out).
        @pl.when(j == n_st - 1)
        def _():
            feats = acc_ref[...] * inv_s                          # (tb, D) f32
            logits = jnp.dot(feats, w_proj_ref[...],
                             preferred_element_type=jnp.float32)
            out_ref[...] = (logits + b_proj_ref[...]).astype(out_ref.dtype)

    itemsize = jnp.dtype(emb_table.dtype).itemsize
    est = (2 * tb * ts * D * itemsize       # emb_buf (double buffered gather)
           + 2 * tb * ts * D * 4            # live f32 activations
           + tb * D * 4                     # pooled-sum accumulator
           + 2 * S * D * itemsize           # pos table
           + 2 * D * D * itemsize           # w_enc
           + 2 * D * Lp * 4                 # w_proj
           + 2 * tb * Lp * 4 + 8 * (D + Lp))

    grid_spec = pltpu.PrefetchScalarGridSpec(
        num_scalar_prefetch=1,
        grid=(NC, n_bt_pc, n_st),
        in_specs=[
            pl.BlockSpec((S, D), lambda c, ib, j, tok: (0, 0)),     # pos (once)
            pl.BlockSpec((D, D), lambda c, ib, j, tok: (0, 0)),     # w_enc
            pl.BlockSpec((1, D), lambda c, ib, j, tok: (0, 0)),     # b_enc
            pl.BlockSpec((D, Lp), lambda c, ib, j, tok: (0, 0)),    # w_proj
            pl.BlockSpec((1, Lp), lambda c, ib, j, tok: (0, 0)),    # b_proj
            pl.BlockSpec(memory_space=pl.ANY),                      # emb table (HBM)
        ],
        out_specs=pl.BlockSpec(
            (tb, Lp), lambda c, ib, j, tok: (c * n_bt_pc + ib, 0)),
        scratch_shapes=[
            pltpu.VMEM((2, tb, ts, D), emb_table.dtype),
            pltpu.VMEM((tb, D), jnp.float32),
            pltpu.SemaphoreType.DMA((2,)),
        ])

    out_padded = pl.pallas_call(
        kernel,
        out_shape=jax.ShapeDtypeStruct((B, Lp), jnp.float32),
        grid_spec=grid_spec,
        compiler_params=pltpu.CompilerParams(
            dimension_semantics=("parallel", "arbitrary", "arbitrary"),
            vmem_limit_bytes=_vmem_limit(est)),
    )(tokens_flat, pos_emb, w_enc, b_enc_2d, w_proj_p, b_proj_p, emb_table)

    return out_padded[:, :L]


# ----------------------------------------------------------------------------
# Path 2: small-D fallback — gather with XLA, stream (B, S, D) via BlockSpec.
# ----------------------------------------------------------------------------
def _forward_streamed(tokens, params, tb, ts):
    emb_table = params["emb_table"]
    pos_emb = params["pos_emb"]
    w_enc = params["w_enc"]

    B, S = tokens.shape
    V, D = emb_table.shape
    L = params["w_proj"].shape[1]
    Lp = ((L + 127) // 128) * 128
    n_bt, n_st = B // tb, S // ts

    w_proj_p, b_proj_p, b_enc_2d = _pad_proj(params, D, Lp, L)

    # Per-row DMAs would be sub-512B here (descriptor-overhead bound), so
    # gather in the wrapper and stream the embedding slab through the pipeline.
    x = jnp.take(emb_table, jnp.clip(tokens, 0, V - 1), axis=0)     # (B, S, D)

    inv_s = 1.0 / float(S)
    encode_step = _make_encode_step(tb, ts, D)

    def kernel(x_ref, pos_ref, w_enc_ref, b_enc_ref, w_proj_ref, b_proj_ref,
               out_ref, acc_ref):
        j = pl.program_id(1)
        n_seq = pl.num_programs(1)

        @pl.when(j == 0)
        def _():
            acc_ref[...] = jnp.zeros_like(acc_ref)

        pos_tile = pos_ref[pl.ds(pl.multiple_of(j * ts, ts), ts), :]
        acc_ref[...] += encode_step(x_ref[...], pos_tile,
                                    w_enc_ref[...], b_enc_ref[...])

        @pl.when(j == n_seq - 1)
        def _():
            feats = acc_ref[...] * inv_s
            logits = jnp.dot(feats, w_proj_ref[...],
                             preferred_element_type=jnp.float32)
            out_ref[...] = (logits + b_proj_ref[...]).astype(out_ref.dtype)

    itemsize = jnp.dtype(x.dtype).itemsize
    est = (2 * tb * ts * D * itemsize + 2 * tb * ts * D * 4 + tb * D * 4
           + 2 * S * D * itemsize + 2 * D * D * itemsize + 2 * D * Lp * 4
           + 2 * tb * Lp * 4 + 8 * (D + Lp))

    grid_spec = pltpu.PrefetchScalarGridSpec(
        num_scalar_prefetch=0,
        grid=(n_bt, n_st),
        in_specs=[
            pl.BlockSpec((tb, ts, D), lambda i, j: (i, j, 0)),      # embeddings
            pl.BlockSpec((S, D), lambda i, j: (0, 0)),              # pos (once)
            pl.BlockSpec((D, D), lambda i, j: (0, 0)),              # w_enc
            pl.BlockSpec((1, D), lambda i, j: (0, 0)),              # b_enc
            pl.BlockSpec((D, Lp), lambda i, j: (0, 0)),             # w_proj
            pl.BlockSpec((1, Lp), lambda i, j: (0, 0)),             # b_proj
        ],
        out_specs=pl.BlockSpec((tb, Lp), lambda i, j: (i, 0)),
        scratch_shapes=[pltpu.VMEM((tb, D), jnp.float32)])

    out_padded = pl.pallas_call(
        kernel,
        out_shape=jax.ShapeDtypeStruct((B, Lp), jnp.float32),
        grid_spec=grid_spec,
        compiler_params=pltpu.CompilerParams(
            dimension_semantics=("parallel", "arbitrary"),
            vmem_limit_bytes=_vmem_limit(est)),
    )(x, pos_emb, w_enc, b_enc_2d, w_proj_p, b_proj_p)

    return out_padded[:, :L]


# ----------------------------------------------------------------------------
# Public entry point.
# ----------------------------------------------------------------------------
def text_classifier_forward(tokens, params, *, tile_override=None):
    """tokens: int32 [B, S].  Returns logits f32 [B, num_labels]."""
    emb_table = params["emb_table"]
    B, S = tokens.shape
    V, D = emb_table.shape
    itemsize = jnp.dtype(emb_table.dtype).itemsize

    # VMEM budget per generation (v5e/v6e 128 MiB, v7x 64 MiB), leaving room
    # for double-buffered weight streams and compiler scratch.
    cap = _vmem_capacity_bytes()
    budget = max(16 * 1024 * 1024, cap // 2 - (8 << 20))

    # Fused gather only pays off when each per-token DMA moves a lane-aligned
    # row (D % 128 == 0, >= 256B in bf16); otherwise stream a gathered slab.
    if D % 128 == 0 and S % 8 == 0:
        tiles = tile_override or _choose_gather_tiles(B, S, D, itemsize, budget)
        if tiles is not None:
            tb, ts = tiles
            if B % tb == 0 and S % ts == 0:
                return _forward_fused_gather(tokens, params, tb, ts)

    tb, ts = tile_override or (_pick_tile(B, 32), _pick_tile(S, 128))
    return _forward_streamed(tokens, params, tb, ts)


# ----------------------------------------------------------------------------
# Parameters + pure-JAX reference.
# ----------------------------------------------------------------------------
def make_params(key, vocab_size, seq_len, embed_dim, num_labels,
                stream_dtype=jnp.bfloat16):
    ks = jax.random.split(key, 5)
    scale = 0.02
    return {
        # Dominant HBM streams stored bf16 (f32 accumulation in the kernel).
        "emb_table": (scale * jax.random.normal(
            ks[0], (vocab_size, embed_dim), jnp.float32)).astype(stream_dtype),
        "pos_emb": (scale * jax.random.normal(
            ks[1], (seq_len, embed_dim), jnp.float32)).astype(stream_dtype),
        "w_enc": (scale * jax.random.normal(
            ks[2], (embed_dim, embed_dim), jnp.float32)).astype(stream_dtype),
        "b_enc": jnp.zeros((embed_dim,), jnp.float32),
        # nn.Linear(embed_dim, num_labels): torch weight is (L, D); stored (D, L).
        "w_proj": scale * jax.random.normal(
            ks[3], (embed_dim, num_labels), jnp.float32),
        "b_proj": scale * jax.random.normal(
            ks[4], (num_labels,), jnp.float32),
    }


def reference_forward(tokens, params):
    """Pure-JAX reference mirroring the kernel math (for a sanity check)."""
    emb = jnp.take(params["emb_table"], tokens, axis=0) + params["pos_emb"][None]
    h = jnp.einsum("bsd,de->bse", emb, params["w_enc"],
                   preferred_element_type=jnp.float32)
    h = jnp.tanh(h + params["b_enc"][None, None, :])
    feats = jnp.mean(h, axis=1)
    return jnp.dot(feats, params["w_proj"].astype(jnp.float32),
                   preferred_element_type=jnp.float32) + params["b_proj"]


if __name__ == "__main__":
    # --- Test 1: tiny module-spec shapes (small D -> streamed fallback). ---
    B, S, V, D, L = 2, 8, 64, 32, 4
    kp, kt = jax.random.split(jax.random.PRNGKey(0))
    params = make_params(kp, V, S, D, L)
    tokens = jax.random.randint(kt, (B, S), 0, V, dtype=jnp.int32)

    logits = text_classifier_forward(tokens, params)
    jax.block_until_ready(logits)
    assert logits.shape == (B, L) and logits.dtype == jnp.float32
    assert jnp.allclose(logits, reference_forward(tokens, params),
                        atol=1e-2, rtol=1e-2)

    # --- Test 2: lane-aligned D exercises the fused HBM-gather kernel with
    #     cross-batch-tile prefetch (default tile choice). ---
    B2, S2, V2, D2, L2 = 32, 128, 512, 256, 4
    kp2, kt2 = jax.random.split(jax.random.PRNGKey(1))
    params2 = make_params(kp2, V2, S2, D2, L2)
    tokens2 = jax.random.randint(kt2, (B2, S2), 0, V2, dtype=jnp.int32)

    logits2 = text_classifier_forward(tokens2, params2)
    jax.block_until_ready(logits2)
    ref2 = reference_forward(tokens2, params2)
    assert logits2.shape == (B2, L2) and logits2.dtype == jnp.float32
    assert jnp.allclose(logits2, ref2, atol=1e-2, rtol=1e-2)

    # --- Test 3: same inputs with forced smaller seq tiles to exercise the
    #     multi-seq-tile pooling accumulator + double-buffered gather path. ---
    logits3 = text_classifier_forward(tokens2, params2, tile_override=(8, 32))
    jax.block_until_ready(logits3)
    assert jnp.allclose(logits3, ref2, atol=1e-2, rtol=1e-2)

    print("KERNEL_OK")
</pallas_src>

<mosaic_0001>
module attributes {stable_mosaic.version = 11 : i64} {
  func.func @kernel(%arg0: i32, %arg1: i32, %arg2: memref<2x8x32xbf16, #tpu.memory_space<vmem>>, %arg3: memref<8x32xbf16, #tpu.memory_space<vmem>>, %arg4: memref<32x32xbf16, #tpu.memory_space<vmem>>, %arg5: memref<1x32xf32, #tpu.memory_space<vmem>>, %arg6: memref<32x128xf32, #tpu.memory_space<vmem>>, %arg7: memref<1x128xf32, #tpu.memory_space<vmem>>, %arg8: memref<2x128xf32, #tpu.memory_space<vmem>>, %arg9: memref<2x32xf32, #tpu.memory_space<vmem>>) attributes {dimension_semantics = [#tpu.dimension_semantics<parallel>, #tpu.dimension_semantics<arbitrary>], iteration_bounds = array<i64: 1, 1>, scalar_prefetch = 0 : i64, scratch_operands = 1 : i64, tpu.core_type = #tpu.core_type<tc>, window_params = [{transform_indices = @transform_0, window_bounds = array<i64: 2, 8, 32>}, {pipeline_mode = #tpu.pipeline_mode<synchronous>, transform_indices = @transform_1, window_bounds = array<i64: 8, 32>}, {pipeline_mode = #tpu.pipeline_mode<synchronous>, transform_indices = @transform_2, window_bounds = array<i64: 32, 32>}, {pipeline_mode = #tpu.pipeline_mode<synchronous>, transform_indices = @transform_3, window_bounds = array<i64: 1, 32>}, {pipeline_mode = #tpu.pipeline_mode<synchronous>, transform_indices = @transform_4, window_bounds = array<i64: 32, 128>}, {pipeline_mode = #tpu.pipeline_mode<synchronous>, transform_indices = @transform_5, window_bounds = array<i64: 1, 128>}, {transform_indices = @transform_6, window_bounds = array<i64: 2, 128>}]} {
    %c0_i32 = arith.constant 0 : i32
    %0 = arith.cmpi eq, %arg1, %c0_i32 : i32
    %1 = arith.extui %0 : i1 to i32
    %c0_i32_0 = arith.constant 0 : i32
    %2 = arith.cmpi ne, %1, %c0_i32_0 : i32
    scf.if %2 {
      %cst_15 = arith.constant 0.000000e+00 : f32
      %26 = vector.broadcast %cst_15 : f32 to vector<2x32xf32>
      %c0_16 = arith.constant 0 : index
      %c0_17 = arith.constant 0 : index
      %27 = vector.load %arg9[%c0_16, %c0_17] : memref<2x32xf32, #tpu.memory_space<vmem>>, vector<2x32xf32>
      tpu.vector_store %arg9[%c0_16, %c0_17], %26 {strides = array<i32>} : memref<2x32xf32, #tpu.memory_space<vmem>>, vector<2x32xf32>,
    } else {
    }
    %c8_i32 = arith.constant 8 : i32
    %3 = arith.muli %arg1, %c8_i32 : i32
    %4 = tpu.assume_multiple %3, 8 : i32
    %5 = arith.index_cast %4 : i32 to index
    %c0 = arith.constant 0 : index
    %6 = vector.load %arg3[%5, %c0] : memref<8x32xbf16, #tpu.memory_space<vmem>>, vector<8x32xbf16>
    %c0_1 = arith.constant 0 : index
    %c0_2 = arith.constant 0 : index
    %7 = vector.load %arg9[%c0_1, %c0_2] : memref<2x32xf32, #tpu.memory_space<vmem>>, vector<2x32xf32>
    %c0_3 = arith.constant 0 : index
    %c0_4 = arith.constant 0 : index
    %c0_5 = arith.constant 0 : index
    %8 = vector.load %arg2[%c0_3, %c0_4, %c0_5] : memref<2x8x32xbf16, #tpu.memory_space<vmem>>, vector<2x8x32xbf16>
    %c0_6 = arith.constant 0 : index
    %c0_7 = arith.constant 0 : index
    %9 = vector.load %arg4[%c0_6, %c0_7] : memref<32x32xbf16, #tpu.memory_space<vmem>>, vector<32x32xbf16>
    %c0_8 = arith.constant 0 : index
    %c0_9 = arith.constant 0 : index
    %10 = vector.load %arg5[%c0_8, %c0_9] : memref<1x32xf32, #tpu.memory_space<vmem>>, vector<1x32xf32>
    %11 = vector.shape_cast %6 : vector<8x32xbf16> to vector<1x8x32xbf16>
    %12 = vector.broadcast %11 : vector<1x8x32xbf16> to vector<2x8x32xbf16>
    %13 = arith.addf %8, %12 : vector<2x8x32xbf16>
    %14 = vector.shape_cast %13 : vector<2x8x32xbf16> to vector<16x32xbf16>
    %cst = arith.constant dense<0.000000e+00> : vector<16x32xf32>
    %15 = tpu.matmul %14, %9, %cst {dimension_numbers = #tpu.dot_dimension_numbers<[1], [0], [0], [1], [0, 0, 1, 1], [], []>} : vector<16x32xbf16>, vector<32x32xbf16>, vector<16x32xf32> -> vector<16x32xf32>
    %16 = vector.broadcast %10 : vector<1x32xf32> to vector<16x32xf32>
    %17 = arith.addf %15, %16 : vector<16x32xf32>
    %18 = math.tanh %17 : vector<16x32xf32>
    %19 = vector.shape_cast %18 : vector<16x32xf32> to vector<2x8x32xf32>
    %cst_10 = arith.constant dense<0.000000e+00> : vector<2x32xf32>
    %20 = vector.multi_reduction <add>, %19, %cst_10 [1] : vector<2x8x32xf32> to vector<2x32xf32>
    %21 = arith.addf %7, %20 : vector<2x32xf32>
    %c0_11 = arith.constant 0 : index
    %c0_12 = arith.constant 0 : index
    %22 = vector.load %arg9[%c0_11, %c0_12] : memref<2x32xf32, #tpu.memory_space<vmem>>, vector<2x32xf32>
    tpu.vector_store %arg9[%c0_11, %c0_12], %21 {strides = array<i32>} : memref<2x32xf32, #tpu.memory_space<vmem>>, vector<2x32xf32>,
    %c0_i32_13 = arith.constant 0 : i32
    %23 = arith.cmpi eq, %arg1, %c0_i32_13 : i32
    %24 = arith.extui %23 : i1 to i32
    %c0_i32_14 = arith.constant 0 : i32
    %25 = arith.cmpi ne, %24, %c0_i32_14 : i32
    scf.if %25 {
      %c0_15 = arith.constant 0 : index
      %c0_16 = arith.constant 0 : index
      %26 = vector.load %arg9[%c0_15, %c0_16] : memref<2x32xf32, #tpu.memory_space<vmem>>, vector<2x32xf32>
      %cst_17 = arith.constant 1.250000e-01 : f32
      %27 = vector.broadcast %cst_17 : f32 to vector<2x32xf32>
      %28 = arith.mulf %26, %27 : vector<2x32xf32>
      %c0_18 = arith.constant 0 : index
      %c0_19 = arith.constant 0 : index
      %29 = vector.load %arg6[%c0_18, %c0_19] : memref<32x128xf32, #tpu.memory_space<vmem>>, vector<32x128xf32>
      %cst_20 = arith.constant dense<0.000000e+00> : vector<2x128xf32>
      %30 = tpu.matmul %28, %29, %cst_20 {dimension_numbers = #tpu.dot_dimension_numbers<[1], [0], [0], [1], [0, 0, 1, 1], [], []>} : vector<2x32xf32>, vector<32x128xf32>, vector<2x128xf32> -> vector<2x128xf32>
      %c0_21 = arith.constant 0 : index
      %c0_22 = arith.constant 0 : index
      %31 = vector.load %arg7[%c0_21, %c0_22] : memref<1x128xf32, #tpu.memory_space<vmem>>, vector<1x128xf32>
      %32 = vector.broadcast %31 : vector<1x128xf32> to vector<2x128xf32>
      %33 = arith.addf %30, %32 : vector<2x128xf32>
      %c0_23 = arith.constant 0 : index
      %c0_24 = arith.constant 0 : index
      %34 = vector.load %arg8[%c0_23, %c0_24] : memref<2x128xf32, #tpu.memory_space<vmem>>, vector<2x128xf32>
      tpu.vector_store %arg8[%c0_23, %c0_24], %33 {strides = array<i32>} : memref<2x128xf32, #tpu.memory_space<vmem>>, vector<2x128xf32>,
    } else {
    }
    return
  }
  func.func @transform_0(%arg0: i32, %arg1: i32) -> (i32, i32, i32) {
    %c0_i32 = arith.constant 0 : i32
    %c0_i32_0 = arith.constant 0 : i32
    return %arg0, %arg1, %c0_i32 : i32, i32, i32
  }
  func.func @transform_1(%arg0: i32, %arg1: i32) -> (i32, i32) {
    %c0_i32 = arith.constant 0 : i32
    %c0_i32_0 = arith.constant 0 : i32
    %c0_i32_1 = arith.constant 0 : i32
    return %c0_i32, %c0_i32_0 : i32, i32
  }
  func.func @transform_2(%arg0: i32, %arg1: i32) -> (i32, i32) {
    %c0_i32 = arith.constant 0 : i32
    %c0_i32_0 = arith.constant 0 : i32
    %c0_i32_1 = arith.constant 0 : i32
    return %c0_i32, %c0_i32_0 : i32, i32
  }
  func.func @transform_3(%arg0: i32, %arg1: i32) -> (i32, i32) {
    %c0_i32 = arith.constant 0 : i32
    %c0_i32_0 = arith.constant 0 : i32
    %c0_i32_1 = arith.constant 0 : i32
    return %c0_i32, %c0_i32_0 : i32, i32
  }
  func.func @transform_4(%arg0: i32, %arg1: i32) -> (i32, i32) {
    %c0_i32 = arith.constant 0 : i32
    %c0_i32_0 = arith.constant 0 : i32
    %c0_i32_1 = arith.constant 0 : i32
    return %c0_i32, %c0_i32_0 : i32, i32
  }
  func.func @transform_5(%arg0: i32, %arg1: i32) -> (i32, i32) {
    %c0_i32 = arith.constant 0 : i32
    %c0_i32_0 = arith.constant 0 : i32
    %c0_i32_1 = arith.constant 0 : i32
    return %c0_i32, %c0_i32_0 : i32, i32
  }
  func.func @transform_6(%arg0: i32, %arg1: i32) -> (i32, i32) {
    %c0_i32 = arith.constant 0 : i32
    %c0_i32_0 = arith.constant 0 : i32
    return %arg0, %c0_i32 : i32, i32
  }
}

</mosaic_0001>

<llo_original>
// kernel: tpu_custom_call.1
$region0: #{tpu_custom_call.1}
  #allocation0 [shape = 'u32[]', space=smem, size = 0x4, offset = 0x4, fixed_abs, tag = 'smem constant byte address 0x4 - core index']
  #allocation1 [shape = 'u32[144,128]{1,0:T(1,128)}', space=vmem, size = 0x12000, scoped, tag = 'internal scratch']
  #allocation2 [shape = 'f32[2,32]{1,0:T(2,128)}', space=vmem, size = 0x400, scoped, tag = 'scratch operand']
  %s0 = inlined_call_operand.hbm [shape: bf16[2,8,32], index: 0, kind: input, shape index: {}]
  %s1 = inlined_call_operand.hbm [shape: bf16[8,32], index: 1, kind: input, shape index: {}]
  %s2 = inlined_call_operand.hbm [shape: bf16[32,32], index: 2, kind: input, shape index: {}]
  %s3 = inlined_call_operand.vmem [shape: f32[1,32], index: 3, kind: input, shape index: {}]
  %s4 = inlined_call_operand.hbm [shape: f32[32,128], index: 4, kind: input, shape index: {}]
  %s5 = inlined_call_operand.vmem [shape: f32[1,128], index: 5, kind: input, shape index: {}]
  %s6 = inlined_call_operand.hbm [shape: f32[2,128], index: 6, kind: output, shape index: {}]
  %s7 = sld [smem:[#allocation0]]
  $region58: #{tpu_custom_call.1} parent=0
    _
  %s9 = ssub.s32 1, %s7
  %s10 = scalar_select 0, %s9, %s7
  $region1: #{tpu_custom_call.1} parent=0
    #allocation3 [shape = 'u8[4096]{0}', space=vmem, size = 0x1000, scoped, tag = 'input window, operand 0, single buffered']
    #allocation4 [shape = 's32[1]{0}', space=sflag, size = 0x4, scoped, tag = 'scoped memory for tpu_custom_call.1']
    #allocation5 [shape = 's32[1]{0}', space=sflag, size = 0x4, scoped, tag = 'scoped memory for tpu_custom_call.1']
    #allocation6 [shape = 'u8[2048]{0}', space=vmem, size = 0x800, scoped, tag = 'input window, operand 1, single buffered']
    #allocation7 [shape = 's32[1]{0}', space=sflag, size = 0x4, scoped, tag = 'scoped memory for tpu_custom_call.1']
    #allocation8 [shape = 'u8[8192]{0}', space=vmem, size = 0x2000, scoped, tag = 'input window, operand 2, single buffered']
    #allocation9 [shape = 'u8[16384]{0}', space=vmem, size = 0x4000, scoped, tag = 'input window, operand 4, single buffered']
    #allocation10 [shape = 's32[1]{0}', space=sflag, size = 0x4, scoped, tag = 'scoped memory for tpu_custom_call.1']
    #allocation11 [shape = 'u8[1024]{0}', space=vmem, size = 0x400, scoped, tag = 'output window, operand 0, single buffered']
    %11 = vsyncpa [#allocation4], 0
    %12 = vsyncpa [#allocation7], 0
    %13 = vsyncpa [#allocation10], 0
    %14 = vsyncpa [#allocation5], 0
    // Predicated region
    $region2: #{tpu_custom_call.1} parent=1 // pred_check
      _
    $region3: #{tpu_custom_call.1} parent=1 // pred_check_branch
      %16 = sbr.rel (0) target = $region5
    $region4: #{tpu_custom_call.1} parent=1 // pred_region
      %s18 = ssub.s32 128, 128
      %19 = vsyncadd [#allocation4], %s18
      %s20 = sshll.u32 [#allocation3], 4
      %s21 = int_to_ptr.vmem [resolvable:$true] %s20
      %26 = dma.hbm_to_vmem [thread:$0]  %s0, 128, %s21, [#allocation4], 64, 64, 4
    $region5: #{tpu_custom_call.1} parent=1 // pred_fallthru
      _
    // Predicated region
    $region6: #{tpu_custom_call.1} parent=1 // pred_check
      _
    $region7: #{tpu_custom_call.1} parent=1 // pred_check_branch
      %28 = sbr.rel (0) target = $region9
    $region8: #{tpu_custom_call.1} parent=1 // pred_region
      %s30 = ssub.s32 64, 64
      %31 = vsyncadd [#allocation7], %s30
      %s33 = sshll.u32 [#allocation6], 4
      %s34 = int_to_ptr.vmem [resolvable:$true] %s33
      %36 = dma.hbm_to_vmem [thread:$0]  %s1, 64, %s34, [#allocation7]
    $region9: #{tpu_custom_call.1} parent=1 // pred_fallthru
      _
    // Predicated region
    $region10: #{tpu_custom_call.1} parent=1 // pred_check
      _
    $region11: #{tpu_custom_call.1} parent=1 // pred_check_branch
      %38 = sbr.rel (0) target = $region13
    $region12: #{tpu_custom_call.1} parent=1 // pred_region
      %s40 = ssub.s32 256, 256
      %41 = vsyncadd [#allocation7], %s40
      %s42 = sshll.u32 [#allocation8], 4
      %s43 = int_to_ptr.vmem [resolvable:$true] %s42
      %48 = dma.hbm_to_vmem [thread:$0]  %s2, 256, %s43, [#allocation7], 64, 64, 4
    $region13: #{tpu_custom_call.1} parent=1 // pred_fallthru
      _
    // Predicated region
    $region14: #{tpu_custom_call.1} parent=1 // pred_check
      _
    $region15: #{tpu_custom_call.1} parent=1 // pred_check_branch
      %50 = sbr.rel (0) target = $region17
    $region16: #{tpu_custom_call.1} parent=1 // pred_region
      _
    $region17: #{tpu_custom_call.1} parent=1 // pred_fallthru
      _
    // Predicated region
    $region18: #{tpu_custom_call.1} parent=1 // pred_check
      _
    $region19: #{tpu_custom_call.1} parent=1 // pred_check_branch
      %52 = sbr.rel (0) target = $region21
    $region20: #{tpu_custom_call.1} parent=1 // pred_region
      %s54 = ssub.s32 512, 512
      %55 = vsyncadd [#allocation10], %s54
      %s56 = sshll.u32 [#allocation9], 4
      %s57 = int_to_ptr.vmem [resolvable:$true] %s56
      %62 = dma.hbm_to_vmem [thread:$0]  %s4, 512, %s57, [#allocation10], 128, 128, 8
    $region21: #{tpu_custom_call.1} parent=1 // pred_fallthru
      _
    // Predicated region
    $region22: #{tpu_custom_call.1} parent=1 // pred_check
      _
    $region23: #{tpu_custom_call.1} parent=1 // pred_check_branch
      %64 = sbr.rel (0) target = $region25
    $region24: #{tpu_custom_call.1} parent=1 // pred_region
      _
    $region25: #{tpu_custom_call.1} parent=1 // pred_fallthru
      _
    // Predicated region
    $region26: #{tpu_custom_call.1} parent=1 // pred_check
      _
    $region27: #{tpu_custom_call.1} parent=1 // pred_check_branch
      %66 = sbr.rel (0) target = $region29
    $region28: #{tpu_custom_call.1} parent=1 // pred_region
      %67 = dma.done [#allocation4], 128
    $region29: #{tpu_custom_call.1} parent=1 // pred_fallthru
      _
    // Predicated region
    $region30: #{tpu_custom_call.1} parent=1 // pred_check
      _
    $region31: #{tpu_custom_call.1} parent=1 // pred_check_branch
      %69 = sbr.rel (0) target = $region33
    $region32: #{tpu_custom_call.1} parent=1 // pred_region
      %70 = dma.done [#allocation7], 64
    $region33: #{tpu_custom_call.1} parent=1 // pred_fallthru
      _
    // Predicated region
    $region34: #{tpu_custom_call.1} parent=1 // pred_check
      _
    $region35: #{tpu_custom_call.1} parent=1 // pred_check_branch
      %72 = sbr.rel (0) target = $region37
    $region36: #{tpu_custom_call.1} parent=1 // pred_region
      %73 = dma.done [#allocation7], 256
    $region37: #{tpu_custom_call.1} parent=1 // pred_fallthru
      _
    // Predicated region
    $region38: #{tpu_custom_call.1} parent=1 // pred_check
      _
    $region39: #{tpu_custom_call.1} parent=1 // pred_check_branch
      %75 = sbr.rel (0) target = $region41
    $region40: #{tpu_custom_call.1} parent=1 // pred_region
      %76 = dma.done [#allocation10], 512
    $region41: #{tpu_custom_call.1} parent=1 // pred_fallthru
      _
    %p78 = scmp.eq.s32.totalorder 0, 0
    // Predicated region
    $region42: #{tpu_custom_call.1} parent=1 // pred_check
      %p79 = pneg %p78
    $region43: #{tpu_custom_call.1} parent=1 // pred_check_branch
      %81 = sbr.rel (%p79) target = $region45
    $region44: #{tpu_custom_call.1} parent=1 // pred_region
      %vm82 = vcmask 254976
      %83 = vst.msk [vmem:[#allocation2] sm:$0x3] %vm82, 0.0
    $region45: #{tpu_custom_call.1} parent=1 // pred_fallthru
      _
    %s84 = smul.u32 0, 8
    %s85 = sshra.s32 %s84, 3
    %s86 = sand.u32 %s84, 7
    %s87 = smul.addr %s85, 4
    %s88 = scalar_lea.vmem [#allocation6], %s87
    %v89 = vld [vmem:[%s88] sm:$0xf]
    %v90 = vld [vmem:[#allocation2] sm:$0x3]
    %v91 = vld [vmem:[#allocation3] sm:$0xf]
    %v92 = vld [vmem:[#allocation3 + $0x4] sm:$0xf]
    %v93 = vld [vmem:[#allocation8] sm:$0xf]
    %v94 = vld [vmem:[#allocation8 + $0x4] sm:$0xf]
    %v95 = vld [vmem:[#allocation8 + $0x8] sm:$0xf]
    %v96 = vld [vmem:[#allocation8 + $0xc] sm:$0xf]
    %v97 = vld [vmem:[%s3] sm:$0x1]
    %v98 = vadd.bf16 %v91, %v89
    %v99 = vadd.bf16 %v92, %v89
    %v101 = vlaneseq
    %v102 = vshrl.u32 %v101, 7
    %v103 = vsub.s32 0, %v102
    %v104 = vrot.slane %v97, %v103
    %v108 = vunpack.c.l.b16 %v98
    %v109 = vunpack.c.l.b16 %v99
    %v110 = vpack.c.b16 %v109, %v108
    %v115 = vunpack.c.l.b16 %v93
    %v116 = vunpack.c.l.b16 %v94
    %v117 = vunpack.c.l.b16 %v95
    %v118 = vunpack.c.l.b16 %v96
    %v119 = vpack.c.b16 %v116, %v115
    %v120 = vpack.c.b16 %v118, %v117
    %vm123 = vcmask 261120
    %v125 = vsel %vm123, %v110, 0
    %127 = vmatprep.subr.bf16.mxu0 0
    %128 = vmatpush1.bf16.msra.mxu0 0
    %129 = vmatprep.subr.bf16.mxu0 0
    %130 = vmatpush1.bf16.msra.mxu0 0
    %131 = vmatprep.subr.bf16.mxu0 0
    %132 = vmatpush1.bf16.msra.mxu0 0
    %133 = vmatprep.subr.bf16.mxu0 0
    %134 = vmatpush1.bf16.msra.mxu0 0
    %135 = vmatprep.subr.bf16.mxu0 0
    %136 = vmatpush1.bf16.msra.mxu0 0
    %137 = vmatprep.subr.bf16.mxu0 0
    %138 = vmatpush1.bf16.msra.mxu0 0
    %139 = vmatprep.subr.bf16.mxu0 0
    %140 = vmatpush1.bf16.msra.mxu0 %v120
    %141 = vmatprep.subr.bf16.mxu0 0
    %142 = vmatpush1.bf16.msra.mxu0 %v119
    %143 = vmatprep.subr.bf16.mxu0 0
    %144 = vmatpush2.bf16.msra.mxu0 0
    %145 = vmatprep.subr.bf16.mxu0 0
    %146 = vmatpush2.bf16.msra.mxu0 0
    %147 = vmatprep.subr.bf16.mxu0 0
    %148 = vmatpush2.bf16.msra.mxu0 0
    %149 = vmatprep.subr.bf16.mxu0 0
    %150 = vmatpush2.bf16.msra.mxu0 0
    %151 = vmatprep.subr.bf16.mxu0 0
    %152 = vmatpush2.bf16.msra.mxu0 0
    %153 = vmatprep.subr.bf16.mxu0 0
    %154 = vmatpush2.bf16.msra.mxu0 0
    %155 = vmatprep.subr.bf16.mxu0 0
    %156 = vmatpush2.bf16.msra.mxu0 0
    %157 = vmatprep.subr.bf16.mxu0 0
    %158 = vmatpush2.bf16.msra.mxu0 0
    %159 = vmatprep.mubr.bf16.mxu0 0
    %160 = vmatmul.mubr.bf16.gmra.mxu0 %v125
    %v161 = vpop.f32.mrf.mxu0
    %v162 = vadd.f32 %v104, %v161
    %v163 = vpop.f32.mrf.mxu0
    %v164 = vpop.f32.mrf.mxu0
    %v165 = vadd.f32 %v104, %v164
    %v166 = vpop.f32.mrf.mxu0
    %167 = vdwg.mxu0
    %v168 = vtanh.pop %v162
    %v169 = vtanh.pop %v165
    %v170 = vsel %vm123, %v168, 0.0
    %v171 = vrot.slane %v170, 4
    %v172 = vadd.f32 %v170, %v171
    %v173 = vrot.slane %v172, 2
    %v174 = vadd.f32 %v172, %v173
    %v175 = vrot.slane %v174, 1
    %v176 = vadd.f32 %v174, %v175
    %v177 = vsel %vm123, %v169, 0.0
    %v178 = vrot.slane %v177, 4
    %v179 = vadd.f32 %v177, %v178
    %v180 = vrot.slane %v179, 2
    %v181 = vadd.f32 %v179, %v180
    %v182 = vrot.slane %v181, 1
    %v183 = vadd.f32 %v181, %v182
    %vm186 = vcmask 1041409
    %v187 = vsel %vm186, %v183, %v176
    %v189 = vadd.f32 %v90, %v187
    %vm190 = vcmask 254976
    %191 = vst.msk [vmem:[#allocation2] sm:$0x3] %vm190, %v189
    // Predicated region
    $region46: #{tpu_custom_call.1} parent=1 // pred_check
      %p192 = pneg %p78
    $region47: #{tpu_custom_call.1} parent=1 // pred_check_branch
      %194 = sbr.rel (%p192) target = $region49
    $region48: #{tpu_custom_call.1} parent=1 // pred_region
      %v195 = vld [vmem:[#allocation2] sm:$0x3]
      %v196 = vmul.f32 %v195, 0.125
      %v197 = vld [vmem:[#allocation9] sm:$0xff]
      %v198 = vld [vmem:[#allocation9 + $0x8] sm:$0xff]
      %v199 = vld [vmem:[#allocation9 + $0x10] sm:$0xff]
      %v200 = vld [vmem:[#allocation9 + $0x18] sm:$0xff]
      %v201 = vld [vmem:[%s5] sm:$0x1]
      %v203 = vlaneseq
      %v204 = vshrl.u32 %v203, 7
      %v205 = vsub.s32 0, %v204
      %v206 = vrot.slane %v201, %v205
      %v209 = vsel %vm123, %v196, 0
      %211 = vmatprep.subr.mxu0 0.0
      %212 = vmatpush1.msra.mxu0 0.0
      %213 = vmatprep.subr.mxu0 0.0
      %214 = vmatpush1.msra.mxu0 0.0
      %215 = vmatprep.subr.mxu0 0.0
      %216 = vmatpush1.msra.mxu0 0.0
      %217 = vmatprep.subr.mxu0 0.0
      %218 = vmatpush1.msra.mxu0 0.0
      %219 = vmatprep.subr.mxu0 0.0
      %220 = vmatpush1.msra.mxu0 0.0
      %221 = vmatprep.subr.mxu0 0.0
      %222 = vmatpush1.msra.mxu0 0.0
      %223 = vmatprep.subr.mxu0 0.0
      %224 = vmatpush1.msra.mxu0 0.0
      %225 = vmatprep.subr.mxu0 0.0
      %226 = vmatpush1.msra.mxu0 0.0
      %227 = vmatprep.subr.mxu0 0.0
      %228 = vmatpush1.msra.mxu0 0.0
      %229 = vmatprep.subr.mxu0 0.0
      %230 = vmatpush1.msra.mxu0 0.0
      %231 = vmatprep.subr.mxu0 0.0
      %232 = vmatpush1.msra.mxu0 0.0
      %233 = vmatprep.subr.mxu0 0.0
      %234 = vmatpush1.msra.mxu0 0.0
      %235 = vmatprep.subr.mxu0 0.0
      %236 = vmatpush1.msra.mxu0 %v200
      %237 = vmatprep.subr.mxu0 0.0
      %238 = vmatpush1.msra.mxu0 %v199
      %239 = vmatprep.subr.mxu0 0.0
      %240 = vmatpush1.msra.mxu0 %v198
      %241 = vmatprep.subr.mxu0 0.0
      %242 = vmatpush1.msra.mxu0 %v197
      %243 = vmatprep.subr.mxu0 0.0
      %244 = vmatpush2.msra.mxu0 0.0
      %245 = vmatprep.subr.mxu0 0.0
      %246 = vmatpush2.msra.mxu0 0.0
      %247 = vmatprep.subr.mxu0 0.0
      %248 = vmatpush2.msra.mxu0 0.0
      %249 = vmatprep.subr.mxu0 0.0
      %250 = vmatpush2.msra.mxu0 0.0
      %251 = vmatprep.subr.mxu0 0.0
      %252 = vmatpush2.msra.mxu0 0.0
      %253 = vmatprep.subr.mxu0 0.0
      %254 = vmatpush2.msra.mxu0 0.0
      %255 = vmatprep.subr.mxu0 0.0
      %256 = vmatpush2.msra.mxu0 0.0
      %257 = vmatprep.subr.mxu0 0.0
      %258 = vmatpush2.msra.mxu0 0.0
      %259 = vmatprep.subr.mxu0 0.0
      %260 = vmatpush2.msra.mxu0 0.0
      %261 = vmatprep.subr.mxu0 0.0
      %262 = vmatpush2.msra.mxu0 0.0
      %263 = vmatprep.subr.mxu0 0.0
      %264 = vmatpush2.msra.mxu0 0.0
      %265 = vmatprep.subr.mxu0 0.0
      %266 = vmatpush2.msra.mxu0 0.0
      %267 = vmatprep.subr.mxu0 0.0
      %268 = vmatpush2.msra.mxu0 0.0
      %269 = vmatprep.subr.mxu0 0.0
      %270 = vmatpush2.msra.mxu0 0.0
      %271 = vmatprep.subr.mxu0 0.0
      %272 = vmatpush2.msra.mxu0 0.0
      %273 = vmatprep.subr.mxu0 0.0
      %274 = vmatpush2.msra.mxu0 0.0
      %275 = vmatprep.mubr.f32.mxu0 0.0
      %276 = vmatmul.mubr.f32.gmra.mxu0 %v209
      %v277 = vpop.f32.mrf.mxu0
      %v278 = vadd.f32 %v206, %v277
      %v279 = vpop.f32.mrf.mxu0
      %280 = vdwg.mxu0
      %281 = vst [vmem:[#allocation11] sm:$0x3] %v278
    $region49: #{tpu_custom_call.1} parent=1 // pred_fallthru
      _
    // Predicated region
    $region50: #{tpu_custom_call.1} parent=1 // pred_check
      _
    $region51: #{tpu_custom_call.1} parent=1 // pred_check_branch
      %283 = sbr.rel (0) target = $region53
    $region52: #{tpu_custom_call.1} parent=1 // pred_region
      %s285 = ssub.s32 32, 32
      %286 = vsyncadd [#allocation5], %s285
      %s288 = sshll.u32 [#allocation11], 4
      %s289 = int_to_ptr.vmem [resolvable:$true] %s288
      %291 = dma.vmem_to_hbm [thread:$0]  %s289, 32, %s6, [#allocation5]
    $region53: #{tpu_custom_call.1} parent=1 // pred_fallthru
      _
    // Predicated region
    $region54: #{tpu_custom_call.1} parent=1 // pred_check
      _
    $region55: #{tpu_custom_call.1} parent=1 // pred_check_branch
      %293 = sbr.rel (0) target = $region57
    $region56: #{tpu_custom_call.1} parent=1 // pred_region
      %294 = dma.done [#allocation5], 32
    $region57: #{tpu_custom_call.1} parent=1 // pred_fallthru
      _
    %295 = vsyncpa [#allocation4], 1
    %296 = vsyncpa [#allocation7], 1
    %297 = vsyncpa [#allocation10], 1
    %298 = vsyncpa [#allocation5], 1

</llo_original>
